<compile_context>
chip_gen: v7x
topology: tpu7x:2x2x1
jax: 0.10.0
libtpu: 0.0.40
codegen_flags: <defaults>
</compile_context>

<pallas_src>
import functools

import jax
import jax.numpy as jnp
from jax.experimental import pallas as pl
from jax.experimental.pallas import tpu as pltpu


# -------------------------- VMEM / tile budgeting --------------------------

_TARGET_BLOCK_BYTES = 4 * 1024 * 1024    # ~4 MiB per input block
_MAX_BLOCK_BYTES = 6 * 1024 * 1024       # hard cap per block (4x buffering < 32 MiB)
_VMEM_LIMIT_BYTES = 32 * 1024 * 1024     # explicit scoped-VMEM budget; safe on
                                         # v5e/v6e (128 MiB phys) and v7x (64 MiB)


def _sublane_multiple(itemsize: int) -> int:
    """Row granularity matching packed sublanes: 8 (f32), 16 (bf16), 32 (i8)."""
    return 8 * max(1, 4 // max(1, itemsize))


def _row_tile(n: int, d: int, itemsize: int) -> int:
    """Batch tile for the (N, D) row kernel (D kept whole)."""
    sub = _sublane_multiple(itemsize)
    tb = max(1, _TARGET_BLOCK_BYTES // max(1, d * itemsize))
    # Keep >= ~4 grid steps so double-buffering is live and v7x's two
    # TensorCores each get >= 2 blocks (when the batch is large enough).
    tb = min(tb, max(sub, -(-n // 4)))
    tb = max(sub, (tb // sub) * sub)
    return min(tb, n)


def _spatial_tile(b: int, c: int, l: int, itemsize: int) -> int:
    """Lane tile for the (B, C, L) channel kernel (C kept whole)."""
    target = max(1, _TARGET_BLOCK_BYTES // max(1, c * itemsize))
    if target >= l:
        tl = l                                   # full extent (always legal)
    else:
        tl = max(128, (target // 128) * 128)     # multiple of 128

    def steps(t):
        return b * -(-l // t)

    # Prefer >= 4 total grid steps; shrink the tile in 128-lane units.
    while steps(tl) < 4 and tl > 128:
        tl = max(128, ((tl // 2) // 128) * 128)
    return min(tl, l)


def _compiler_params(sem):
    return pltpu.CompilerParams(dimension_semantics=sem,
                                vmem_limit_bytes=_VMEM_LIMIT_BYTES)


# -------------------------------- kernels -----------------------------------


def _mean_norm_rows_kernel(x_ref, o_ref):
    # (TB, D) tile; D is always the whole reduction dim -> exact one-pass mean.
    x = x_ref[...].astype(jnp.float32)
    m = jnp.mean(x, axis=-1, keepdims=True)          # lane reduce per row (XLU)
    o_ref[...] = (x - m).astype(o_ref.dtype)


def _mean_norm_channels_kernel(x_ref, o_ref):
    # (1, C, TL) tile; reduce over the channel (sublane) axis, L stays on lanes.
    x = x_ref[...].astype(jnp.float32)
    m = jnp.mean(x, axis=1, keepdims=True)           # sublane reduce (XLU)
    o_ref[...] = (x - m).astype(o_ref.dtype)


def _row_sum_kernel(x_ref, s_ref, acc_ref, *, d_total, td):
    j = pl.program_id(1)

    @pl.when(j == 0)
    def _():
        acc_ref[...] = jnp.zeros_like(acc_ref)

    x = x_ref[...].astype(jnp.float32)
    # The last D tile may run past the row end; zero out-of-bounds lanes.
    col = jax.lax.broadcasted_iota(jnp.int32, x.shape, 1) + j * td
    x = jnp.where(col < d_total, x, 0.0)
    acc_ref[...] += jnp.sum(x, axis=-1, keepdims=True)

    @pl.when(j == pl.num_programs(1) - 1)
    def _():
        s_ref[...] = acc_ref[...]


def _sub_mean_kernel(x_ref, s_ref, o_ref, *, inv_d):
    x = x_ref[...].astype(jnp.float32)
    o_ref[...] = (x - s_ref[...] * inv_d).astype(o_ref.dtype)


# ------------------------------- wrappers ------------------------------------


def _mean_norm_rows(x2: jax.Array) -> jax.Array:
    """x2: (N, D) -> x2 - mean(x2, axis=1, keepdims=True)."""
    n, d = x2.shape
    itemsize = jnp.dtype(x2.dtype).itemsize
    sub = _sublane_multiple(itemsize)
    if sub * d * itemsize > _MAX_BLOCK_BYTES:
        return _mean_norm_rows_wide(x2)          # very wide rows: tile D too

    tb = _row_tile(n, d, itemsize)
    grid = (pl.cdiv(n, tb),)
    return pl.pallas_call(
        _mean_norm_rows_kernel,
        out_shape=jax.ShapeDtypeStruct((n, d), x2.dtype),
        grid=grid,
        in_specs=[pl.BlockSpec((tb, d), lambda i: (i, 0))],
        out_specs=pl.BlockSpec((tb, d), lambda i: (i, 0)),
        compiler_params=_compiler_params(("parallel",)),
        cost_estimate=pl.CostEstimate(flops=2 * n * d, transcendentals=0,
                                      bytes_accessed=2 * n * d * itemsize),
    )(x2)


def _mean_norm_rows_wide(x2: jax.Array) -> jax.Array:
    """Two-pass (row-sum, then subtract) path for rows too wide for one block."""
    n, d = x2.shape
    itemsize = jnp.dtype(x2.dtype).itemsize
    tb = min(n, _sublane_multiple(itemsize))
    td = (max(1, _TARGET_BLOCK_BYTES // max(1, tb * itemsize)) // 128) * 128
    td = max(128, td)
    if td >= d:
        td = d
    grid = (pl.cdiv(n, tb), pl.cdiv(d, td))

    sums = pl.pallas_call(
        functools.partial(_row_sum_kernel, d_total=d, td=td),
        out_shape=jax.ShapeDtypeStruct((n, 1), jnp.float32),
        grid=grid,
        in_specs=[pl.BlockSpec((tb, td), lambda i, j: (i, j))],
        out_specs=pl.BlockSpec((tb, 1), lambda i, j: (i, 0)),
        scratch_shapes=[pltpu.VMEM((tb, 1), jnp.float32)],
        compiler_params=_compiler_params(("parallel", "arbitrary")),
        cost_estimate=pl.CostEstimate(flops=n * d, transcendentals=0,
                                      bytes_accessed=n * d * itemsize + n * 4),
    )(x2)

    return pl.pallas_call(
        functools.partial(_sub_mean_kernel, inv_d=1.0 / d),
        out_shape=jax.ShapeDtypeStruct((n, d), x2.dtype),
        grid=grid,
        in_specs=[pl.BlockSpec((tb, td), lambda i, j: (i, j)),
                  pl.BlockSpec((tb, 1), lambda i, j: (i, 0))],
        out_specs=pl.BlockSpec((tb, td), lambda i, j: (i, j)),
        compiler_params=_compiler_params(("parallel", "parallel")),
        cost_estimate=pl.CostEstimate(flops=2 * n * d, transcendentals=0,
                                      bytes_accessed=2 * n * d * itemsize + n * 4),
    )(x2, sums)


def _mean_norm_channels(x3: jax.Array) -> jax.Array:
    """x3: (B, C, L) -> x3 - mean(x3, axis=1, keepdims=True), no HBM relayout."""
    b, c, l = x3.shape
    itemsize = jnp.dtype(x3.dtype).itemsize
    tl = _spatial_tile(b, c, l, itemsize)
    grid = (b, pl.cdiv(l, tl))
    return pl.pallas_call(
        _mean_norm_channels_kernel,
        out_shape=jax.ShapeDtypeStruct((b, c, l), x3.dtype),
        grid=grid,
        in_specs=[pl.BlockSpec((1, c, tl), lambda i, j: (i, 0, j))],
        out_specs=pl.BlockSpec((1, c, tl), lambda i, j: (i, 0, j)),
        compiler_params=_compiler_params(("parallel", "parallel")),
        cost_estimate=pl.CostEstimate(flops=2 * b * c * l, transcendentals=0,
                                      bytes_accessed=2 * b * c * l * itemsize),
    )(x3)


class MeanNorm1d:
    """Pallas port of modules/base/modules.py::MeanNorm1d (no parameters).

    forward(x) = x - x.mean(dim=1, keepdim=True)
    """

    def __call__(self, x: jax.Array) -> jax.Array:
        assert x.ndim >= 2, "MeanNorm1d requires at least 2 dims"
        if x.ndim == 2:
            # TODO(synk): a 2D input with D < 128 stays lane-sparse on stores;
            # a D-on-sublane layout would need an extra HBM transpose pass.
            return _mean_norm_rows(x)

        b, c = x.shape[0], x.shape[1]
        l = 1
        for s in x.shape[2:]:
            l *= s
        x3 = x.reshape(b, c, l)          # contiguous flatten: no HBM relayout
        itemsize = jnp.dtype(x.dtype).itemsize
        if c * min(128, max(1, l)) * itemsize > _MAX_BLOCK_BYTES:
            # Extremely large channel dim: fall back to the row layout
            # (relayout copies, but correct).  Rare in practice.
            xt = jnp.moveaxis(x3, 1, 2).reshape(b * l, c)
            out = _mean_norm_rows(xt)
            return jnp.moveaxis(out.reshape(b, l, c), 2, 1).reshape(x.shape)
        return _mean_norm_channels(x3).reshape(x.shape)


if __name__ == "__main__":
    key = jax.random.PRNGKey(0)
    k1, k2, k3 = jax.random.split(key, 3)
    mod = MeanNorm1d()

    # (B, C, H, W) activation-style input: mean over channel dim (native 3D path).
    x4 = jax.random.normal(k1, (2, 4, 16, 16), dtype=jnp.float32)
    y4 = mod(x4)
    jax.block_until_ready(y4)
    ref4 = x4 - jnp.mean(x4, axis=1, keepdims=True)
    assert y4.shape == x4.shape and y4.dtype == x4.dtype
    assert jnp.allclose(y4, ref4, atol=1e-5, rtol=1e-5), "4D mismatch"

    # Plain 2D (N, D): mean over dim 1 (row path).
    x2 = jax.random.normal(k2, (8, 32), dtype=jnp.float32)
    y2 = mod(x2)
    jax.block_until_ready(y2)
    ref2 = x2 - jnp.mean(x2, axis=1, keepdims=True)
    assert y2.shape == x2.shape and y2.dtype == x2.dtype
    assert jnp.allclose(y2, ref2, atol=1e-5, rtol=1e-5), "2D mismatch"

    # bf16 3D (B, C, L): exercises packed-dtype handling on the channel path.
    x3 = jax.random.normal(k3, (2, 16, 256), dtype=jnp.bfloat16)
    y3 = mod(x3)
    jax.block_until_ready(y3)
    x3f = x3.astype(jnp.float32)
    ref3 = (x3f - jnp.mean(x3f, axis=1, keepdims=True)).astype(jnp.bfloat16)
    assert y3.shape == x3.shape and y3.dtype == x3.dtype
    assert jnp.allclose(y3.astype(jnp.float32), ref3.astype(jnp.float32),
                        atol=2e-2, rtol=2e-2), "bf16 3D mismatch"

    print("KERNEL_OK")
</pallas_src>

<mosaic_0001>
module attributes {stable_mosaic.version = 11 : i64} {
  func.func @_mean_norm_channels_kernel(%arg0: i32, %arg1: i32, %arg2: memref<1x4x128xf32, #tpu.memory_space<vmem>>, %arg3: memref<1x4x128xf32, #tpu.memory_space<vmem>>) attributes {dimension_semantics = [#tpu.dimension_semantics<parallel>, #tpu.dimension_semantics<parallel>], iteration_bounds = array<i64: 2, 2>, scalar_prefetch = 0 : i64, scratch_operands = 0 : i64, tpu.core_type = #tpu.core_type<tc>, window_params = [{transform_indices = @transform_0, window_bounds = array<i64: 1, 4, 128>}, {transform_indices = @transform_1, window_bounds = array<i64: 1, 4, 128>}]} {
    %c0 = arith.constant 0 : index
    %c0_0 = arith.constant 0 : index
    %c0_1 = arith.constant 0 : index
    %0 = vector.load %arg2[%c0, %c0_0, %c0_1] : memref<1x4x128xf32, #tpu.memory_space<vmem>>, vector<1x4x128xf32>
    %cst = arith.constant dense<0.000000e+00> : vector<1x128xf32>
    %1 = vector.multi_reduction <add>, %0, %cst [1] : vector<1x4x128xf32> to vector<1x128xf32>
    %2 = vector.shape_cast %1 : vector<1x128xf32> to vector<1x1x128xf32>
    %cst_2 = arith.constant 4.000000e+00 : f32
    %3 = vector.broadcast %cst_2 : f32 to vector<1x1x128xf32>
    %4 = arith.divf %2, %3 : vector<1x1x128xf32>
    %5 = vector.broadcast %4 : vector<1x1x128xf32> to vector<1x4x128xf32>
    %6 = arith.subf %0, %5 : vector<1x4x128xf32>
    %c0_3 = arith.constant 0 : index
    %c0_4 = arith.constant 0 : index
    %c0_5 = arith.constant 0 : index
    %7 = vector.load %arg3[%c0_3, %c0_4, %c0_5] : memref<1x4x128xf32, #tpu.memory_space<vmem>>, vector<1x4x128xf32>
    tpu.vector_store %arg3[%c0_3, %c0_4, %c0_5], %6 {strides = array<i32>} : memref<1x4x128xf32, #tpu.memory_space<vmem>>, vector<1x4x128xf32>,
    return
  }
  func.func @transform_0(%arg0: i32, %arg1: i32) -> (i32, i32, i32) {
    %c0_i32 = arith.constant 0 : i32
    %c0_i32_0 = arith.constant 0 : i32
    return %arg0, %c0_i32, %arg1 : i32, i32, i32
  }
  func.func @transform_1(%arg0: i32, %arg1: i32) -> (i32, i32, i32) {
    %c0_i32 = arith.constant 0 : i32
    %c0_i32_0 = arith.constant 0 : i32
    return %arg0, %c0_i32, %arg1 : i32, i32, i32
  }
}

</mosaic_0001>

<llo_original>
// kernel: tpu_custom_call.1
$region0: #{tpu_custom_call.1}
  #allocation0 [shape = 'u32[]', space=smem, size = 0x4, offset = 0x4, fixed_abs, tag = 'smem constant byte address 0x4 - core index']
  #allocation1 [shape = 'u32[144,128]{1,0:T(1,128)}', space=vmem, size = 0x12000, scoped, tag = 'internal scratch']
  %s0 = inlined_call_operand.hbm [shape: f32[2,4,256], index: 0, kind: input, shape index: {}]
  %s1 = inlined_call_operand.hbm [shape: f32[2,4,256], index: 1, kind: output, shape index: {}]
  %s2 = sld [smem:[#allocation0]]
  $region41: #{tpu_custom_call.1} parent=0
    _
  %s4 = ssub.s32 1, %s2
  %s5 = scalar_select 0, %s4, %s2
  $region1: #{tpu_custom_call.1} parent=0
    #allocation2 [shape = 'u8[4096]{0}', space=vmem, size = 0x1000, scoped, tag = 'input window, operand 0']
    #allocation3 [shape = 's32[2]{0}', space=sflag, size = 0x8, scoped, tag = 'scoped memory for tpu_custom_call.1']
    #allocation4 [shape = 's32[2]{0}', space=sflag, size = 0x8, scoped, tag = 'scoped memory for tpu_custom_call.1']
    #allocation5 [shape = 'u8[4096]{0}', space=vmem, size = 0x1000, scoped, tag = 'output window, operand 0']
    %6 = vsyncpa [#allocation3], 0
    %s7 = scalar_lea.sflag [#allocation3], 1
    %8 = vsyncpa %s7, 0
    %9 = vsyncpa [#allocation4], 0
    %s10 = scalar_lea.sflag [#allocation4], 1
    %11 = vsyncpa %s10, 0
    loop: start=0, step=1, limit=6
    $region2: #{tpu_custom_call.1} parent=1 // loop_pre_header
      _
    $region3: #{tpu_custom_call.1} parent=1 // loop_header
      %s13 = sphi 0, %s17
      %p14 = scmp.ge.s32.totalorder %s13, 6
      %s20 = sphi 0, %s32
      %s21 = sphi 0, %s28
      %s22 = sphi 0, %s20
      %s23 = sphi 0, %s21
      %s24 = sphi 0, %s22
      %s25 = sphi 0, %s23
      %s37 = sphi 0, %s39
      %s40 = sphi 0, %s37
      %s41 = sphi 0, %s40
      %s57 = sphi 0, %s41
      %s65 = sphi 0, %s67
      %s68 = sphi 0, %s65
      %s69 = sphi 0, %s68
      %s85 = sphi 0, %s69
    $region4: #{tpu_custom_call.1} parent=1 // loop_header_branch
      %16 = sbr.rel (%p14) target = $region8
    $region5: #{tpu_custom_call.1} parent=1 // loop_body
      %s18 = ssub.s32 %s13, 1
      %s19 = ssub.s32 %s13, 2
      %s26 = sadd.s32 1, %s21
      %p27 = scmp.ge.s32.totalorder %s26, 2
      %s28 = scalar_select %p27, 0, %s26
      %s29 = sadd.s32 1, %s20
      %s30 = scalar_select %p27, %s29, %s20
      %p31 = scmp.ge.s32.totalorder %s30, 2
      %s32 = scalar_select %p31, 0, %s30
      %s33 = ssub.s32 %s20, %s32
      %s34 = ssub.s32 %s21, %s28
      %s35 = sor.u32 %s33, %s34
      %p36 = scmp.eq.s32.totalorder %s35, 0
      %s38 = sadd.s32 %s37, 1
      %s39 = scalar_select %p36, %s37, %s38
      %p42 = pneg %p36
      %p43 = scmp.eq.s32.totalorder %s13, 3
      %p44 = por %p42, %p43
      %p45 = scmp.ne.s32.totalorder %s37, %s40
      %p46 = scmp.eq.s32.totalorder %s13, 0
      %p47 = por %p45, %p46
      %p48 = scmp.ne.s32.totalorder %s37, %s40
      %p49 = scmp.eq.s32.totalorder %s18, 3
      %p50 = por %p48, %p49
      %p51 = scmp.ne.s32.totalorder %s40, %s41
      %p52 = scmp.eq.s32.totalorder %s18, 0
      %p53 = por %p51, %p52
      %p54 = scmp.ne.s32.totalorder %s40, %s41
      %p55 = scmp.eq.s32.totalorder %s19, 3
      %p56 = por %p54, %p55
      %p58 = scmp.ne.s32.totalorder %s41, %s57
      %p59 = scmp.eq.s32.totalorder %s19, 0
      %p60 = por %p58, %p59
      %s61 = ssub.s32 %s20, %s32
      %s62 = ssub.s32 %s21, %s28
      %s63 = sor.u32 %s61, %s62
      %p64 = scmp.eq.s32.totalorder %s63, 0
      %s66 = sadd.s32 %s65, 1
      %s67 = scalar_select %p64, %s65, %s66
      %p70 = pneg %p64
      %p71 = scmp.eq.s32.totalorder %s13, 3
      %p72 = por %p70, %p71
      %p73 = scmp.ne.s32.totalorder %s65, %s68
      %p74 = scmp.eq.s32.totalorder %s13, 0
      %p75 = por %p73, %p74
      %p76 = scmp.ne.s32.totalorder %s65, %s68
      %p77 = scmp.eq.s32.totalorder %s18, 3
      %p78 = por %p76, %p77
      %p79 = scmp.ne.s32.totalorder %s68, %s69
      %p80 = scmp.eq.s32.totalorder %s18, 0
      %p81 = por %p79, %p80
      %p82 = scmp.ne.s32.totalorder %s68, %s69
      %p83 = scmp.eq.s32.totalorder %s19, 3
      %p84 = por %p82, %p83
      %p86 = scmp.ne.s32.totalorder %s69, %s85
      %p87 = scmp.eq.s32.totalorder %s19, 0
      %p88 = por %p86, %p87
      %p89 = scmp.le.s32.totalorder 1, %s13
      %p90 = scmp.lt.s32.totalorder %s13, 5
      %p91 = pnand %p89, %p90
      %p92 = pneg %p91
      // Predicated region
      $region9: #{tpu_custom_call.1} parent=5 // pred_check
        _
      $region10: #{tpu_custom_call.1} parent=5 // pred_check_branch
        %94 = sbr.rel (%p91) target = $region12
      $region11: #{tpu_custom_call.1} parent=5 // pred_region
        %s95 = ssub.s32 %s13, 1
      $region12: #{tpu_custom_call.1} parent=5 // pred_fallthru
        _
      %p96 = scmp.lt.s32.totalorder %s13, 4
      // Predicated region
      $region13: #{tpu_custom_call.1} parent=5 // pred_check
        %p97 = pneg %p96
      $region14: #{tpu_custom_call.1} parent=5 // pred_check_branch
        %99 = sbr.rel (%p97) target = $region16
      $region15: #{tpu_custom_call.1} parent=5 // pred_region
        // Predicated region
        $region17: #{tpu_custom_call.1} parent=15 // pred_check
          %p100 = pneg %p47
        $region18: #{tpu_custom_call.1} parent=15 // pred_check_branch
          %102 = sbr.rel (%p100) target = $region20
        $region19: #{tpu_custom_call.1} parent=15 // pred_region
          %s103 = sand.u32 %s37, 1
          %s104 = scalar_lea.sflag [#allocation3], %s103
          %s105 = sand.u32 %s37, 1
          %s106 = smul.addr %s105, 4
          %s107 = scalar_lea.vmem [#allocation2], %s106
          %s109 = ssub.s32 64, 64
          %110 = vsyncadd %s104, %s109
          %s111 = smul.addr %s20, 2
          %s112 = sadd.s32 %s21, %s111
          %s113 = smul.addr %s112, 64
          %s114 = scalar_lea.hbm %s0, %s113
          %s116 = sshll.u32 %s107, 4
          %s117 = int_to_ptr.vmem [resolvable:$true] %s116
          %119 = dma.hbm_to_vmem [thread:$0]  %s114, 64, %s117, %s104
        $region20: #{tpu_custom_call.1} parent=15 // pred_fallthru
          _
      $region16: #{tpu_custom_call.1} parent=5 // pred_fallthru
        _
      %p120 = scmp.le.s32.totalorder 1, %s13
      %p121 = scmp.lt.s32.totalorder %s13, 5
      %p122 = pnand %p120, %p121
      %p123 = pneg %p122
      // Predicated region
      $region21: #{tpu_custom_call.1} parent=5 // pred_check
        _
      $region22: #{tpu_custom_call.1} parent=5 // pred_check_branch
        %125 = sbr.rel (%p122) target = $region24
      $region23: #{tpu_custom_call.1} parent=5 // pred_region
        %s126 = ssub.s32 %s13, 1
        %s127 = sand.u32 %s40, 1
        %s128 = scalar_lea.sflag [#allocation3], %s127
        %s129 = sand.u32 %s40, 1
        %s130 = smul.addr %s129, 4
        %s131 = scalar_lea.vmem [#allocation2], %s130
        // Predicated region
        $region25: #{tpu_custom_call.1} parent=23 // pred_check
          %p132 = pneg %p53
        $region26: #{tpu_custom_call.1} parent=23 // pred_check_branch
          %134 = sbr.rel (%p132) target = $region28
        $region27: #{tpu_custom_call.1} parent=23 // pred_region
          %135 = dma.done %s128, 64
        $region28: #{tpu_custom_call.1} parent=23 // pred_fallthru
          _
        %s136 = sand.u32 %s40, 1
        %s137 = scalar_lea.sflag [#allocation3], %s136
        %s138 = sand.u32 %s40, 1
        %s139 = smul.addr %s138, 4
        %s140 = scalar_lea.vmem [#allocation2], %s139
        %p141 = pneg %p53
        %p142 = pneg %p50
        %p143 = pneg %p81
        %p144 = pneg %p78
        %s145 = sand.u32 %s68, 1
        %s146 = scalar_lea.sflag [#allocation4], %s145
        %s147 = sand.u32 %s68, 1
        %s148 = smul.addr %s147, 4
        %s149 = scalar_lea.vmem [#allocation5], %s148
        %v150 = vld [vmem:[%s131] sm:$0xf]
        %vm151 = vcmask 1043456
        %v152 = vsel %vm151, %v150, 0.0
        %v153 = vrot.slane %v152, 4
        %v154 = vadd.f32 %v152, %v153
        %v155 = vrot.slane %v154, 2
        %v156 = vadd.f32 %v154, %v155
        %v157 = vrot.slane %v156, 1
        %v158 = vadd.f32 %v156, %v157
        %v159 = vrcp.pop 4.0
        %v160 = vmul.f32 %v158, %v159
        %v161 = vsub.f32 %v150, %v160
        %162 = vst [vmem:[%s149] sm:$0xf] %v161
        %s163 = sand.u32 %s68, 1
        %s164 = scalar_lea.sflag [#allocation4], %s163
        %s165 = sand.u32 %s68, 1
        %s166 = smul.addr %s165, 4
        %s167 = scalar_lea.vmem [#allocation5], %s166
        // Predicated region
        $region29: #{tpu_custom_call.1} parent=23 // pred_check
          %p168 = pneg %p78
        $region30: #{tpu_custom_call.1} parent=23 // pred_check_branch
          %170 = sbr.rel (%p168) target = $region32
        $region31: #{tpu_custom_call.1} parent=23 // pred_region
          %s172 = ssub.s32 64, 64
          %173 = vsyncadd %s164, %s172
          %s174 = smul.addr %s22, 2
          %s175 = sadd.s32 %s23, %s174
          %s176 = smul.addr %s175, 64
          %s177 = scalar_lea.hbm %s1, %s176
          %s179 = sshll.u32 %s167, 4
          %s180 = int_to_ptr.vmem [resolvable:$true] %s179
          %182 = dma.vmem_to_hbm [thread:$0]  %s180, 64, %s177, %s164
        $region32: #{tpu_custom_call.1} parent=23 // pred_fallthru
          _
      $region24: #{tpu_custom_call.1} parent=5 // pred_fallthru
        _
      %p183 = scmp.le.s32.totalorder 2, %s13
      // Predicated region
      $region33: #{tpu_custom_call.1} parent=5 // pred_check
        %p184 = pneg %p183
      $region34: #{tpu_custom_call.1} parent=5 // pred_check_branch
        %186 = sbr.rel (%p184) target = $region36
      $region35: #{tpu_custom_call.1} parent=5 // pred_region
        %s187 = ssub.s32 %s13, 2
        // Predicated region
        $region37: #{tpu_custom_call.1} parent=35 // pred_check
          %p188 = pneg %p84
        $region38: #{tpu_custom_call.1} parent=35 // pred_check_branch
          %190 = sbr.rel (%p188) target = $region40
        $region39: #{tpu_custom_call.1} parent=35 // pred_region
          %s191 = sand.u32 %s69, 1
          %s192 = scalar_lea.sflag [#allocation4], %s191
          %s193 = sand.u32 %s69, 1
          %s194 = smul.addr %s193, 4
          %s195 = scalar_lea.vmem [#allocation5], %s194
          %196 = dma.done %s192, 64
        $region40: #{tpu_custom_call.1} parent=35 // pred_fallthru
          _
      $region36: #{tpu_custom_call.1} parent=5 // pred_fallthru
        _
    $region6: #{tpu_custom_call.1} parent=1 // loop_footer
      %s17 = sadd.s32 1, %s13
    $region7: #{tpu_custom_call.1} parent=1 // loop_footer_branch
      %12 = sbr.rel target = $region3
    $region8: #{tpu_custom_call.1} parent=1 // loop_exit
      _
    %197 = vsyncpa [#allocation3], 1
    %s198 = scalar_lea.sflag [#allocation3], 1
    %199 = vsyncpa %s198, 1
    %200 = vsyncpa [#allocation4], 1
    %s201 = scalar_lea.sflag [#allocation4], 1
    %202 = vsyncpa %s201, 1

</llo_original>
